<compile_context>
chip_gen: v7x
topology: tpu7x:2x2x1
jax: 0.10.0
libtpu: 0.0.40
codegen_flags: <defaults>
</compile_context>

<pallas_src>
import functools

import jax
import jax.numpy as jnp
from jax.experimental import pallas as pl
from jax.experimental.pallas import tpu as pltpu


def _critic_kernel(x_ref, w1_ref, b1_ref, w2_ref, b2_ref, o_ref, *, bf16_epilogue):
    # Layer 1: Linear(H, H) on the MXU. x tile arrives f32 (single HBM read);
    # cast to bf16 here, W1 is already bf16, accumulate in f32.
    x = x_ref[...].astype(jnp.bfloat16)
    h = jnp.dot(x, w1_ref[...], preferred_element_type=jnp.float32)
    h = h + b1_ref[...]                                  # f32 bias (VPU)

    if bf16_epilogue:
        # v6e/v7x: bf16 VPU/EUP path (~2x tanh throughput, half vreg pressure).
        h = jnp.tanh(h.astype(jnp.bfloat16))
        prod = (h * w2_ref[...].astype(jnp.bfloat16)).astype(jnp.float32)
    else:
        # v5e-safe f32 path.
        h = jnp.tanh(h)
        prod = h * w2_ref[...]

    # Layer 2: Linear(H, 1) as VPU multiply + cross-lane (XLU) reduce.
    # Keep the natural sublane-major (tb, 1) layout -> no in-kernel relayout;
    # the per-step writeback is only tb*4 bytes.
    y = jnp.sum(prod, axis=-1, keepdims=True)            # (tb, 1) f32
    o_ref[...] = (y + b2_ref[0, 0]).astype(o_ref.dtype)


def critic_decoder_forward(x, w1_t, b1, w2_row, b2, *, block_b=2048,
                           bf16_epilogue=False):
    """x: (B, H) f32. Weights: w1_t (H, H) = W1.T, b1 (1, H), w2_row (1, H) = W2 row,
    b2 (1, 1). Returns (B,) f32 critic values (== Flatten(0, -1) of Linear output)."""
    B, H = x.shape
    assert w1_t.shape == (H, H) and b1.shape == (1, H)
    assert w2_row.shape == (1, H) and b2.shape == (1, 1)

    # W1 is small (H*H bf16 = 128 KiB for H=256) and VMEM-resident; a one-time
    # wrapper cast is fine. x is NOT cast in the wrapper (see kernel).
    w1_lo = w1_t.astype(jnp.bfloat16)

    def _round_up(v, m):
        return (v + m - 1) // m * m

    # Batch tiling: tb rows per grid step; partial last tile handled by Pallas
    # (no jnp.pad copy of x). tb is sublane-aligned (multiple of 8).
    tb = min(block_b, _round_up(B, 8))
    grid = (pl.cdiv(B, tb),)

    flops = 2 * B * H * H + 4 * B * H
    bytes_accessed = (B * H * 4          # x tiles (f32, read once)
                      + H * H * 2        # W1 (bf16)
                      + 2 * H * 4 + 4    # b1, w2 row, b2 (f32)
                      + B * 4)           # output (f32)

    out = pl.pallas_call(
        functools.partial(_critic_kernel, bf16_epilogue=bf16_epilogue),
        out_shape=jax.ShapeDtypeStruct((B, 1), jnp.float32),
        grid=grid,
        in_specs=[
            pl.BlockSpec((tb, H), lambda i: (i, 0)),            # x tile (pipelined)
            pl.BlockSpec((H, H), lambda i: (0, 0)),             # W1 (VMEM-resident)
            pl.BlockSpec((1, H), lambda i: (0, 0)),             # b1 (VMEM-resident)
            pl.BlockSpec((1, H), lambda i: (0, 0)),             # w2 row (VMEM-resident)
            pl.BlockSpec(memory_space=pltpu.MemorySpace.SMEM),  # b2 scalar in SMEM
        ],
        out_specs=pl.BlockSpec((tb, 1), lambda i: (i, 0)),      # sublane-major (tb,1)
        compiler_params=pltpu.CompilerParams(
            dimension_semantics=("parallel",),                  # megacore on v7x
            vmem_limit_bytes=32 << 20),
        cost_estimate=pl.CostEstimate(
            flops=flops,
            transcendentals=B * H,
            bytes_accessed=bytes_accessed),
    )(x, w1_lo, b1, w2_row, b2)

    # Flatten(0, -1): (B, 1) -> (B,), free reshape outside the kernel.
    return out.reshape(-1)
    # TODO(synk): for the tiny-batch deployment regime (B ~ 8), per-call weight
    # DMA + launch overhead dominate; fuse this head into the upstream trunk
    # kernel or keep W1/b1/w2 resident across calls (cross-call prefetch, P10).


def init_params(key, hidden_channels=256):
    """Deterministic init mimicking torch.nn.Linear default (uniform +-1/sqrt(fan_in))."""
    k1, k2, k3, k4 = jax.random.split(key, 4)
    H = hidden_channels
    bound = 1.0 / jnp.sqrt(H)
    w1_t = jax.random.uniform(k1, (H, H), jnp.float32, -bound, bound)    # (in, out)
    b1 = jax.random.uniform(k2, (1, H), jnp.float32, -bound, bound)
    w2_row = jax.random.uniform(k3, (1, H), jnp.float32, -bound, bound)  # Linear(H,1) weight row
    b2 = jax.random.uniform(k4, (1, 1), jnp.float32, -bound, bound)
    return w1_t, b1, w2_row, b2


def reference_forward(x, w1_t, b1, w2_row, b2):
    """Pure-f32 reference matching the PyTorch module semantics."""
    h = jnp.tanh(x @ w1_t + b1)
    y = h @ w2_row.T + b2          # (B, 1)
    return y.reshape(-1)           # Flatten(0, -1)


if __name__ == "__main__":
    key = jax.random.PRNGKey(0)
    kx, kp = jax.random.split(key)

    H = 256  # module default hidden_channels
    params = init_params(kp, hidden_channels=H)

    # Case 1: small batch (B=8), single tile.
    B = 8
    x = jax.random.normal(kx, (B, H), jnp.float32)
    out = jax.block_until_ready(critic_decoder_forward(x, *params))
    ref = reference_forward(x, *params)
    assert out.shape == (B,)
    # bf16 MXU operands -> small deviation from the pure-f32 reference.
    assert jnp.allclose(out, ref, atol=5e-2, rtol=5e-2), (out, ref)

    # Case 2: batch not a multiple of the tile -> exercises the partial last
    # block (no jnp.pad copy in the wrapper).
    B2 = 300
    x2 = jax.random.normal(kx, (B2, H), jnp.float32)
    out2 = jax.block_until_ready(
        critic_decoder_forward(x2, *params, block_b=256))
    ref2 = reference_forward(x2, *params)
    assert out2.shape == (B2,)
    assert jnp.allclose(out2, ref2, atol=5e-2, rtol=5e-2), (out2, ref2)

    print("KERNEL_OK")
</pallas_src>

<mosaic_0001>
module attributes {stable_mosaic.version = 11 : i64} {
  func.func @_critic_kernel(%arg0: i32, %arg1: memref<8x256xf32, #tpu.memory_space<vmem>>, %arg2: memref<256x256xbf16, #tpu.memory_space<vmem>>, %arg3: memref<1x256xf32, #tpu.memory_space<vmem>>, %arg4: memref<1x256xf32, #tpu.memory_space<vmem>>, %arg5: memref<1x1xf32, #tpu.memory_space<smem>>, %arg6: memref<8x1xf32, #tpu.memory_space<vmem>>) attributes {dimension_semantics = [#tpu.dimension_semantics<parallel>], iteration_bounds = array<i64: 1>, scalar_prefetch = 0 : i64, scratch_operands = 0 : i64, tpu.core_type = #tpu.core_type<tc>, window_params = [{transform_indices = @transform_0, window_bounds = array<i64: 8, 256>}, {pipeline_mode = #tpu.pipeline_mode<synchronous>, transform_indices = @transform_1, window_bounds = array<i64: 256, 256>}, {pipeline_mode = #tpu.pipeline_mode<synchronous>, transform_indices = @transform_2, window_bounds = array<i64: 1, 256>}, {pipeline_mode = #tpu.pipeline_mode<synchronous>, transform_indices = @transform_3, window_bounds = array<i64: 1, 256>}, {transform_indices = @transform_4, window_bounds = array<i64: 1, 1>}, {transform_indices = @transform_5, window_bounds = array<i64: 8, 1>}]} {
    %c0 = arith.constant 0 : index
    %c0_0 = arith.constant 0 : index
    %0 = vector.load %arg1[%c0, %c0_0] : memref<8x256xf32, #tpu.memory_space<vmem>>, vector<8x256xf32>
    %1 = arith.truncf %0 : vector<8x256xf32> to vector<8x256xbf16>
    %c0_1 = arith.constant 0 : index
    %c0_2 = arith.constant 0 : index
    %2 = vector.load %arg2[%c0_1, %c0_2] : memref<256x256xbf16, #tpu.memory_space<vmem>>, vector<256x256xbf16>
    %cst = arith.constant dense<0.000000e+00> : vector<8x256xf32>
    %3 = tpu.matmul %1, %2, %cst {dimension_numbers = #tpu.dot_dimension_numbers<[1], [0], [0], [1], [0, 0, 1, 1], [], []>} : vector<8x256xbf16>, vector<256x256xbf16>, vector<8x256xf32> -> vector<8x256xf32>
    %c0_3 = arith.constant 0 : index
    %c0_4 = arith.constant 0 : index
    %4 = vector.load %arg3[%c0_3, %c0_4] : memref<1x256xf32, #tpu.memory_space<vmem>>, vector<1x256xf32>
    %5 = vector.broadcast %4 : vector<1x256xf32> to vector<8x256xf32>
    %6 = arith.addf %3, %5 : vector<8x256xf32>
    %7 = math.tanh %6 : vector<8x256xf32>
    %c0_5 = arith.constant 0 : index
    %c0_6 = arith.constant 0 : index
    %8 = vector.load %arg4[%c0_5, %c0_6] : memref<1x256xf32, #tpu.memory_space<vmem>>, vector<1x256xf32>
    %9 = vector.broadcast %8 : vector<1x256xf32> to vector<8x256xf32>
    %10 = arith.mulf %7, %9 : vector<8x256xf32>
    %cst_7 = arith.constant dense<0.000000e+00> : vector<8xf32>
    %11 = vector.multi_reduction <add>, %10, %cst_7 [1] : vector<8x256xf32> to vector<8xf32>
    %12 = vector.shape_cast %11 : vector<8xf32> to vector<8x1xf32>
    %c0_8 = arith.constant 0 : index
    %c0_9 = arith.constant 0 : index
    %13 = memref.load %arg5[%c0_8, %c0_9] : memref<1x1xf32, #tpu.memory_space<smem>>
    %14 = vector.broadcast %13 : f32 to vector<8x1xf32>
    %15 = arith.addf %12, %14 : vector<8x1xf32>
    %c0_10 = arith.constant 0 : index
    %c0_11 = arith.constant 0 : index
    %16 = vector.load %arg6[%c0_10, %c0_11] : memref<8x1xf32, #tpu.memory_space<vmem>>, vector<8x1xf32>
    tpu.vector_store %arg6[%c0_10, %c0_11], %15 {strides = array<i32>} : memref<8x1xf32, #tpu.memory_space<vmem>>, vector<8x1xf32>,
    return
  }
  func.func @transform_0(%arg0: i32) -> (i32, i32) {
    %c0_i32 = arith.constant 0 : i32
    %c0_i32_0 = arith.constant 0 : i32
    return %arg0, %c0_i32 : i32, i32
  }
  func.func @transform_1(%arg0: i32) -> (i32, i32) {
    %c0_i32 = arith.constant 0 : i32
    %c0_i32_0 = arith.constant 0 : i32
    %c0_i32_1 = arith.constant 0 : i32
    return %c0_i32, %c0_i32_0 : i32, i32
  }
  func.func @transform_2(%arg0: i32) -> (i32, i32) {
    %c0_i32 = arith.constant 0 : i32
    %c0_i32_0 = arith.constant 0 : i32
    %c0_i32_1 = arith.constant 0 : i32
    return %c0_i32, %c0_i32_0 : i32, i32
  }
  func.func @transform_3(%arg0: i32) -> (i32, i32) {
    %c0_i32 = arith.constant 0 : i32
    %c0_i32_0 = arith.constant 0 : i32
    %c0_i32_1 = arith.constant 0 : i32
    return %c0_i32, %c0_i32_0 : i32, i32
  }
  func.func @transform_4(%arg0: i32) -> (i32, i32) {
    %c0_i32 = arith.constant 0 : i32
    %c0_i32_0 = arith.constant 0 : i32
    %c0_i32_1 = arith.constant 0 : i32
    return %c0_i32, %c0_i32_0 : i32, i32
  }
  func.func @transform_5(%arg0: i32) -> (i32, i32) {
    %c0_i32 = arith.constant 0 : i32
    %c0_i32_0 = arith.constant 0 : i32
    return %arg0, %c0_i32 : i32, i32
  }
}

</mosaic_0001>

<llo_original>
// kernel: tpu_custom_call.1
$region0: #{tpu_custom_call.1}
  #allocation0 [shape = 'u32[]', space=smem, size = 0x4, offset = 0x4, fixed_abs, tag = 'smem constant byte address 0x4 - core index']
  #allocation1 [shape = 'u32[144,128]{1,0:T(1,128)}', space=vmem, size = 0x12000, scoped, tag = 'internal scratch']
  #allocation2 [shape = 'f32[1,1]{1,0:T(1,128)S(6)}', space=smem, size = 0x200, scoped, tag = 'scoped memory for tpu_custom_call.1']
  %s0 = inlined_call_operand.hbm [shape: f32[8,256], index: 0, kind: input, shape index: {}]
  %s1 = inlined_call_operand.hbm [shape: bf16[256,256], index: 1, kind: input, shape index: {}]
  %s2 = inlined_call_operand.vmem [shape: f32[1,256], index: 2, kind: input, shape index: {}]
  %s3 = inlined_call_operand.vmem [shape: f32[1,256], index: 3, kind: input, shape index: {}]
  %s4 = inlined_call_operand.<no memory space> [shape: f32[1,1], index: 4, kind: input, shape index: {}]
  %s5 = inlined_call_operand.vmem [shape: f32[8,1], index: 5, kind: output, shape index: {}]
  %s6 = sld [smem:[#allocation0]]
  $region38: #{tpu_custom_call.1} parent=0
    _
  %s8 = ssub.s32 1, %s6
  %s9 = scalar_select 0, %s8, %s6
  %10 = sst [smem:[#allocation2]] %s4
  $region1: #{tpu_custom_call.1} parent=0
    #allocation3 [shape = 'u8[8192]{0}', space=vmem, size = 0x2000, scoped, tag = 'input window, operand 0, single buffered']
    #allocation4 [shape = 's32[1]{0}', space=sflag, size = 0x4, scoped, tag = 'scoped memory for tpu_custom_call.1']
    #allocation5 [shape = 'u8[131072]{0}', space=vmem, size = 0x20000, scoped, tag = 'input window, operand 1, single buffered']
    #allocation6 [shape = 's32[1]{0}', space=sflag, size = 0x4, scoped, tag = 'scoped memory for tpu_custom_call.1']
    %11 = vsyncpa [#allocation4], 0
    %12 = vsyncpa [#allocation6], 0
    // Predicated region
    $region2: #{tpu_custom_call.1} parent=1 // pred_check
      _
    $region3: #{tpu_custom_call.1} parent=1 // pred_check_branch
      %14 = sbr.rel (0) target = $region5
    $region4: #{tpu_custom_call.1} parent=1 // pred_region
      %s16 = ssub.s32 256, 256
      %17 = vsyncadd [#allocation4], %s16
      %s19 = sshll.u32 [#allocation3], 4
      %s20 = int_to_ptr.vmem [resolvable:$true] %s19
      %22 = dma.hbm_to_vmem [thread:$0]  %s0, 256, %s20, [#allocation4]
    $region5: #{tpu_custom_call.1} parent=1 // pred_fallthru
      _
    // Predicated region
    $region6: #{tpu_custom_call.1} parent=1 // pred_check
      _
    $region7: #{tpu_custom_call.1} parent=1 // pred_check_branch
      %24 = sbr.rel (0) target = $region9
    $region8: #{tpu_custom_call.1} parent=1 // pred_region
      %s26 = ssub.s32 4096, 4096
      %27 = vsyncadd [#allocation6], %s26
      %s28 = sshll.u32 [#allocation5], 4
      %s29 = int_to_ptr.vmem [resolvable:$true] %s28
      %34 = dma.hbm_to_vmem [thread:$0]  %s1, 4096, %s29, [#allocation6], 128, 128, 8
    $region9: #{tpu_custom_call.1} parent=1 // pred_fallthru
      _
    // Predicated region
    $region10: #{tpu_custom_call.1} parent=1 // pred_check
      _
    $region11: #{tpu_custom_call.1} parent=1 // pred_check_branch
      %36 = sbr.rel (0) target = $region13
    $region12: #{tpu_custom_call.1} parent=1 // pred_region
      _
    $region13: #{tpu_custom_call.1} parent=1 // pred_fallthru
      _
    // Predicated region
    $region14: #{tpu_custom_call.1} parent=1 // pred_check
      _
    $region15: #{tpu_custom_call.1} parent=1 // pred_check_branch
      %38 = sbr.rel (0) target = $region17
    $region16: #{tpu_custom_call.1} parent=1 // pred_region
      _
    $region17: #{tpu_custom_call.1} parent=1 // pred_fallthru
      _
    // Predicated region
    $region18: #{tpu_custom_call.1} parent=1 // pred_check
      _
    $region19: #{tpu_custom_call.1} parent=1 // pred_check_branch
      %40 = sbr.rel (0) target = $region21
    $region20: #{tpu_custom_call.1} parent=1 // pred_region
      _
    $region21: #{tpu_custom_call.1} parent=1 // pred_fallthru
      _
    // Predicated region
    $region22: #{tpu_custom_call.1} parent=1 // pred_check
      _
    $region23: #{tpu_custom_call.1} parent=1 // pred_check_branch
      %42 = sbr.rel (0) target = $region25
    $region24: #{tpu_custom_call.1} parent=1 // pred_region
      %43 = dma.done [#allocation4], 256
    $region25: #{tpu_custom_call.1} parent=1 // pred_fallthru
      _
    // Predicated region
    $region26: #{tpu_custom_call.1} parent=1 // pred_check
      _
    $region27: #{tpu_custom_call.1} parent=1 // pred_check_branch
      %45 = sbr.rel (0) target = $region29
    $region28: #{tpu_custom_call.1} parent=1 // pred_region
      %46 = dma.done [#allocation6], 4096
    $region29: #{tpu_custom_call.1} parent=1 // pred_fallthru
      _
    %v47 = vld [vmem:[#allocation3] sm:$0xff]
    %v48 = vld [vmem:[#allocation3 + $0x8] sm:$0xff]
    %v49 = vpack.c.bf16 %v47, %v47
    %v50 = vpack.c.bf16 %v48, %v48
    %v51 = vld [vmem:[#allocation5] sm:$0xff]
    %v52 = vld [vmem:[#allocation5 + $0x8] sm:$0xff]
    %v53 = vld [vmem:[#allocation5 + $0x10] sm:$0xff]
    %v54 = vld [vmem:[#allocation5 + $0x18] sm:$0xff]
    %v55 = vld [vmem:[#allocation5 + $0x20] sm:$0xff]
    %v56 = vld [vmem:[#allocation5 + $0x28] sm:$0xff]
    %v57 = vld [vmem:[#allocation5 + $0x30] sm:$0xff]
    %v58 = vld [vmem:[#allocation5 + $0x38] sm:$0xff]
    %v59 = vld [vmem:[#allocation5 + $0x40] sm:$0xff]
    %v60 = vld [vmem:[#allocation5 + $0x48] sm:$0xff]
    %v61 = vld [vmem:[#allocation5 + $0x50] sm:$0xff]
    %v62 = vld [vmem:[#allocation5 + $0x58] sm:$0xff]
    %v63 = vld [vmem:[#allocation5 + $0x60] sm:$0xff]
    %v64 = vld [vmem:[#allocation5 + $0x68] sm:$0xff]
    %v65 = vld [vmem:[#allocation5 + $0x70] sm:$0xff]
    %v66 = vld [vmem:[#allocation5 + $0x78] sm:$0xff]
    %v67 = vld [vmem:[#allocation5 + $0x80] sm:$0xff]
    %v68 = vld [vmem:[#allocation5 + $0x88] sm:$0xff]
    %v69 = vld [vmem:[#allocation5 + $0x90] sm:$0xff]
    %v70 = vld [vmem:[#allocation5 + $0x98] sm:$0xff]
    %v71 = vld [vmem:[#allocation5 + $0xa0] sm:$0xff]
    %v72 = vld [vmem:[#allocation5 + $0xa8] sm:$0xff]
    %v73 = vld [vmem:[#allocation5 + $0xb0] sm:$0xff]
    %v74 = vld [vmem:[#allocation5 + $0xb8] sm:$0xff]
    %v75 = vld [vmem:[#allocation5 + $0xc0] sm:$0xff]
    %v76 = vld [vmem:[#allocation5 + $0xc8] sm:$0xff]
    %v77 = vld [vmem:[#allocation5 + $0xd0] sm:$0xff]
    %v78 = vld [vmem:[#allocation5 + $0xd8] sm:$0xff]
    %v79 = vld [vmem:[#allocation5 + $0xe0] sm:$0xff]
    %v80 = vld [vmem:[#allocation5 + $0xe8] sm:$0xff]
    %v81 = vld [vmem:[#allocation5 + $0xf0] sm:$0xff]
    %v82 = vld [vmem:[#allocation5 + $0xf8] sm:$0xff]
    %v83 = vld [vmem:[%s2] sm:$0x3]
    %v85 = vlaneseq
    %v86 = vshrl.u32 %v85, 7
    %v87 = vsub.s32 0, %v86
    %v88 = vrot.slane %v83, %v87
    %v89 = vlaneseq
    %v90 = vshrl.u32 %v89, 7
    %v91 = vsub.s32 1, %v90
    %v92 = vrot.slane %v83, %v91
    %v127 = vunpack.c.l.b16 %v51
    %v128 = vunpack.c.h.b16 %v51
    %v129 = vunpack.c.l.b16 %v52
    %v130 = vunpack.c.h.b16 %v52
    %v131 = vunpack.c.l.b16 %v53
    %v132 = vunpack.c.h.b16 %v53
    %v133 = vunpack.c.l.b16 %v54
    %v134 = vunpack.c.h.b16 %v54
    %v135 = vunpack.c.l.b16 %v55
    %v136 = vunpack.c.h.b16 %v55
    %v137 = vunpack.c.l.b16 %v56
    %v138 = vunpack.c.h.b16 %v56
    %v139 = vunpack.c.l.b16 %v57
    %v140 = vunpack.c.h.b16 %v57
    %v141 = vunpack.c.l.b16 %v58
    %v142 = vunpack.c.h.b16 %v58
    %v143 = vunpack.c.l.b16 %v59
    %v144 = vunpack.c.h.b16 %v59
    %v145 = vunpack.c.l.b16 %v60
    %v146 = vunpack.c.h.b16 %v60
    %v147 = vunpack.c.l.b16 %v61
    %v148 = vunpack.c.h.b16 %v61
    %v149 = vunpack.c.l.b16 %v62
    %v150 = vunpack.c.h.b16 %v62
    %v151 = vunpack.c.l.b16 %v63
    %v152 = vunpack.c.h.b16 %v63
    %v153 = vunpack.c.l.b16 %v64
    %v154 = vunpack.c.h.b16 %v64
    %v155 = vunpack.c.l.b16 %v65
    %v156 = vunpack.c.h.b16 %v65
    %v157 = vunpack.c.l.b16 %v66
    %v158 = vunpack.c.h.b16 %v66
    %v159 = vunpack.c.l.b16 %v67
    %v160 = vunpack.c.h.b16 %v67
    %v161 = vunpack.c.l.b16 %v68
    %v162 = vunpack.c.h.b16 %v68
    %v163 = vunpack.c.l.b16 %v69
    %v164 = vunpack.c.h.b16 %v69
    %v165 = vunpack.c.l.b16 %v70
    %v166 = vunpack.c.h.b16 %v70
    %v167 = vunpack.c.l.b16 %v71
    %v168 = vunpack.c.h.b16 %v71
    %v169 = vunpack.c.l.b16 %v72
    %v170 = vunpack.c.h.b16 %v72
    %v171 = vunpack.c.l.b16 %v73
    %v172 = vunpack.c.h.b16 %v73
    %v173 = vunpack.c.l.b16 %v74
    %v174 = vunpack.c.h.b16 %v74
    %v175 = vunpack.c.l.b16 %v75
    %v176 = vunpack.c.h.b16 %v75
    %v177 = vunpack.c.l.b16 %v76
    %v178 = vunpack.c.h.b16 %v76
    %v179 = vunpack.c.l.b16 %v77
    %v180 = vunpack.c.h.b16 %v77
    %v181 = vunpack.c.l.b16 %v78
    %v182 = vunpack.c.h.b16 %v78
    %v183 = vunpack.c.l.b16 %v79
    %v184 = vunpack.c.h.b16 %v79
    %v185 = vunpack.c.l.b16 %v80
    %v186 = vunpack.c.h.b16 %v80
    %v187 = vunpack.c.l.b16 %v81
    %v188 = vunpack.c.h.b16 %v81
    %v189 = vunpack.c.l.b16 %v82
    %v190 = vunpack.c.h.b16 %v82
    %v191 = vpack.c.b16 %v129, %v127
    %v192 = vpack.c.b16 %v130, %v128
    %v193 = vpack.c.b16 %v133, %v131
    %v194 = vpack.c.b16 %v134, %v132
    %v195 = vpack.c.b16 %v137, %v135
    %v196 = vpack.c.b16 %v138, %v136
    %v197 = vpack.c.b16 %v141, %v139
    %v198 = vpack.c.b16 %v142, %v140
    %v199 = vpack.c.b16 %v145, %v143
    %v200 = vpack.c.b16 %v146, %v144
    %v201 = vpack.c.b16 %v149, %v147
    %v202 = vpack.c.b16 %v150, %v148
    %v203 = vpack.c.b16 %v153, %v151
    %v204 = vpack.c.b16 %v154, %v152
    %v205 = vpack.c.b16 %v157, %v155
    %v206 = vpack.c.b16 %v158, %v156
    %v207 = vpack.c.b16 %v161, %v159
    %v208 = vpack.c.b16 %v162, %v160
    %v209 = vpack.c.b16 %v165, %v163
    %v210 = vpack.c.b16 %v166, %v164
    %v211 = vpack.c.b16 %v169, %v167
    %v212 = vpack.c.b16 %v170, %v168
    %v213 = vpack.c.b16 %v173, %v171
    %v214 = vpack.c.b16 %v174, %v172
    %v215 = vpack.c.b16 %v177, %v175
    %v216 = vpack.c.b16 %v178, %v176
    %v217 = vpack.c.b16 %v181, %v179
    %v218 = vpack.c.b16 %v182, %v180
    %v219 = vpack.c.b16 %v185, %v183
    %v220 = vpack.c.b16 %v186, %v184
    %v221 = vpack.c.b16 %v189, %v187
    %v222 = vpack.c.b16 %v190, %v188
    %255 = vmatprep.subr.bf16.mxu0 %v192
    %256 = vmatpush1.bf16.msra.mxu0 %v191
    %257 = vmatprep.subr.bf16.mxu0 %v194
    %258 = vmatpush1.bf16.msra.mxu0 %v193
    %259 = vmatprep.subr.bf16.mxu0 %v196
    %260 = vmatpush1.bf16.msra.mxu0 %v195
    %261 = vmatprep.subr.bf16.mxu0 %v198
    %262 = vmatpush1.bf16.msra.mxu0 %v197
    %263 = vmatprep.subr.bf16.mxu0 %v200
    %264 = vmatpush1.bf16.msra.mxu0 %v199
    %265 = vmatprep.subr.bf16.mxu0 %v202
    %266 = vmatpush1.bf16.msra.mxu0 %v201
    %267 = vmatprep.subr.bf16.mxu0 %v204
    %268 = vmatpush1.bf16.msra.mxu0 %v203
    %269 = vmatprep.subr.bf16.mxu0 %v206
    %270 = vmatpush1.bf16.msra.mxu0 %v205
    %271 = vmatprep.subr.bf16.mxu0 %v208
    %272 = vmatpush1.bf16.msra.mxu0 %v207
    %273 = vmatprep.subr.bf16.mxu0 %v210
    %274 = vmatpush1.bf16.msra.mxu0 %v209
    %275 = vmatprep.subr.bf16.mxu0 %v212
    %276 = vmatpush1.bf16.msra.mxu0 %v211
    %277 = vmatprep.subr.bf16.mxu0 %v214
    %278 = vmatpush1.bf16.msra.mxu0 %v213
    %279 = vmatprep.subr.bf16.mxu0 %v216
    %280 = vmatpush1.bf16.msra.mxu0 %v215
    %281 = vmatprep.subr.bf16.mxu0 %v218
    %282 = vmatpush1.bf16.msra.mxu0 %v217
    %283 = vmatprep.subr.bf16.mxu0 %v220
    %284 = vmatpush1.bf16.msra.mxu0 %v219
    %285 = vmatprep.subr.bf16.mxu0 %v222
    %286 = vmatpush1.bf16.msra.mxu0 %v221
    %287 = vmatprep.mubr.bf16.mxu0 %v50
    %288 = vmatmul.mubr.bf16.gmra.mrb[0].mxu0 %v49
    %v289 = vpop.f32.mrb[0].mxu0
    %v290 = vadd.f32 %v88, %v289
    %v291 = vpop.f32.mrb[0].mxu0
    %v292 = vadd.f32 %v92, %v291
    %v293 = vpop.f32.mrb[0].mxu0
    %v294 = vpop.f32.mrb[0].mxu0
    %295 = vdwg.mxu0
    %v296 = vtanh.pop %v290
    %v297 = vtanh.pop %v292
    %v298 = vld [vmem:[%s3] sm:$0x3]
    %v300 = vlaneseq
    %v301 = vshrl.u32 %v300, 7
    %v302 = vsub.s32 0, %v301
    %v303 = vrot.slane %v298, %v302
    %v304 = vlaneseq
    %v305 = vshrl.u32 %v304, 7
    %v306 = vsub.s32 1, %v305
    %v307 = vrot.slane %v298, %v306
    %v310 = vmul.f32 %v296, %v303
    %v311 = vmul.f32 %v297, %v307
    %v312 = vadd.f32 %v310, %v311
    %313 = vadd.xlane.f32.xlu0 %v312
    %v314 = vpop.xlane.xlu0 %313
    %s315 = sld [smem:[#allocation2]]
    %v316 = vstv %s315
    %v317 = vadd.f32 %v314, %v316
    %vm318 = vcmask 7168
    %319 = vst.msk [vmem:[%s5] sm:$0xff] %vm318, %v317
    // Predicated region
    $region30: #{tpu_custom_call.1} parent=1 // pred_check
      _
    $region31: #{tpu_custom_call.1} parent=1 // pred_check_branch
      %321 = sbr.rel (0) target = $region33
    $region32: #{tpu_custom_call.1} parent=1 // pred_region
      _
    $region33: #{tpu_custom_call.1} parent=1 // pred_fallthru
      _
    // Predicated region
    $region34: #{tpu_custom_call.1} parent=1 // pred_check
      _
    $region35: #{tpu_custom_call.1} parent=1 // pred_check_branch
      %323 = sbr.rel (0) target = $region37
    $region36: #{tpu_custom_call.1} parent=1 // pred_region
      _
    $region37: #{tpu_custom_call.1} parent=1 // pred_fallthru
      _
    %324 = vsyncpa [#allocation4], 1
    %325 = vsyncpa [#allocation6], 1

</llo_original>
